<compile_context>
chip_gen: v6e
topology: v6e:2x2x1
jax: 0.10.0
libtpu: 0.0.40
codegen_flags: <defaults>
</compile_context>

<pallas_src>
import jax
import jax.numpy as jnp
from jax.experimental import pallas as pl
from jax.experimental.pallas import tpu as pltpu


def _cbam_channel_kernel(w1t_ref, b1_ref, w2t_ref, b2_ref, x_ref, o_ref):
    # w1t_ref: (C, Cr)   -- MLP1 weight, transposed to (in, out)
    # b1_ref : (1, Cr)
    # w2t_ref: (Cr, C)   -- MLP2 weight, transposed
    # b2_ref : (1, C)
    # x_ref  : (Bt, C, HW)
    x = x_ref[...]                                    # native dtype, no full-block cast
    bt = x.shape[0]
    hw = x.shape[2]

    # --- adaptive avg / max pool to (1,1) == reduce over spatial lanes ------
    avg = jnp.sum(x, axis=-1, dtype=jnp.float32) * (1.0 / float(hw))   # (Bt, C) f32
    mx = jnp.max(x, axis=-1).astype(jnp.float32)                        # (Bt, C) f32

    # --- shared MLP, fused: avg & max rows stacked -> 2 matmuls total -------
    pooled = jnp.concatenate([avg, mx], axis=0)       # (2*Bt, C)
    h = jnp.dot(pooled, w1t_ref[...], preferred_element_type=jnp.float32)
    h = jnp.maximum(h + b1_ref[...], 0.0)             # ReLU, (2*Bt, Cr)
    y = jnp.dot(h, w2t_ref[...], preferred_element_type=jnp.float32) + b2_ref[...]

    gate = jax.nn.sigmoid(y[:bt] + y[bt:]).astype(x.dtype)              # (Bt, C)

    # --- broadcast-multiply the gate back onto x (native dtype) -------------
    o_ref[...] = x * gate[:, :, None]


def _vmem_budget_bytes():
    # Per-core VMEM with headroom for Mosaic internal scratch.  v7x has only
    # 64 MiB/TC (vs 128 MiB on v5e/v6e), so never request the full capacity.
    try:
        cap = int(pltpu.get_tpu_info().vmem_capacity_bytes)
    except Exception:
        cap = 64 << 20  # conservative fallback: assume v7x-sized VMEM
    return (cap * 3) // 4


@jax.jit
def cbam_channel(x, w1, b1, w2, b2):
    """x: (B, C, H, W). w1: (Cr, C), b1: (Cr,), w2: (C, Cr), b2: (C,) (PyTorch Linear layout)."""
    B, C, H, W = x.shape
    HW = H * W
    Cr = w1.shape[0]
    itemsize = jnp.dtype(x.dtype).itemsize

    # ---- block sizing: aim for multi-MiB slabs, fit VMEM with headroom -----
    vmem_budget = _vmem_budget_bytes()
    # in + out blocks, double-buffered (4x block), plus a few MiB for weights
    # and compiler scratch.
    max_block = max(1 << 18, (vmem_budget - (6 << 20)) // 4)
    target_block = min(6 << 20, max_block)

    bytes_per_b = C * HW * itemsize
    bt = max(1, target_block // bytes_per_b)
    bt = min(bt, B)
    if B >= 2:
        # Keep >= 2 grid steps so both v7x TensorCores get work.
        bt = min(bt, max(1, B // 2))

    # Ragged last block is fine: Pallas masks out-of-bounds output writes, and
    # the garbage padded rows stay isolated (per-row pooling / matmul / gate).
    n_steps = int(pl.cdiv(B, bt))
    if 1 < n_steps <= 8 and (n_steps % 2) and bt > 1:
        # Small odd grids leave one v7x core idle on the last step; try even.
        alt_bt = int(pl.cdiv(B, n_steps + 1))
        if int(pl.cdiv(B, alt_bt)) % 2 == 0:
            bt = alt_bt
            n_steps = int(pl.cdiv(B, bt))
    # TODO(synk): for B == 1 with very large C*HW, add an HW-split grid axis
    # with carried partial sum/max so the block still fits VMEM and both
    # v7x TensorCores stay busy.

    # Transposed weights / row biases so the fused MLP is (2*Bt, C) @ (C, Cr).
    w1t = jnp.transpose(w1).astype(jnp.float32)       # (C, Cr)
    w2t = jnp.transpose(w2).astype(jnp.float32)       # (Cr, C)
    b1r = b1.reshape(1, Cr).astype(jnp.float32)
    b2r = b2.reshape(1, C).astype(jnp.float32)

    x_flat = x.reshape(B, C, HW)                      # no padding / extra HBM pass

    out_flat = pl.pallas_call(
        _cbam_channel_kernel,
        out_shape=jax.ShapeDtypeStruct((B, C, HW), x.dtype),
        grid_spec=pltpu.PrefetchScalarGridSpec(
            num_scalar_prefetch=0,
            grid=(n_steps,),
            in_specs=[
                pl.BlockSpec((C, Cr), lambda i: (0, 0)),
                pl.BlockSpec((1, Cr), lambda i: (0, 0)),
                pl.BlockSpec((Cr, C), lambda i: (0, 0)),
                pl.BlockSpec((1, C), lambda i: (0, 0)),
                pl.BlockSpec((bt, C, HW), lambda i: (i, 0, 0)),
            ],
            out_specs=pl.BlockSpec((bt, C, HW), lambda i: (i, 0, 0)),
        ),
        compiler_params=pltpu.CompilerParams(
            dimension_semantics=("parallel",),
            vmem_limit_bytes=vmem_budget,
        ),
    )(w1t, b1r, w2t, b2r, x_flat)

    return out_flat.reshape(B, C, H, W)


def _reference(x, w1, b1, w2, b2):
    avg = jnp.mean(x, axis=(2, 3))   # (B, C)
    mx = jnp.max(x, axis=(2, 3))     # (B, C)

    def mlp(v):
        h = jax.nn.relu(v @ w1.T + b1)
        return h @ w2.T + b2

    gate = jax.nn.sigmoid(mlp(avg) + mlp(mx))  # (B, C)
    return x * gate[:, :, None, None]


if __name__ == "__main__":
    # Module config: num_channels=32, reduce_rate=16 -> hidden = 32 // 16 = 2.
    B, C = 2, 32
    reduce_rate = 16
    Cr = C // reduce_rate

    key = jax.random.PRNGKey(0)
    k1, k2, k3, k4, kx1, kx2 = jax.random.split(key, 6)

    # Deterministic synthetic parameters (PyTorch Linear layout: (out, in)).
    w1 = jax.random.normal(k1, (Cr, C), dtype=jnp.float32) * 0.1
    b1 = jax.random.normal(k2, (Cr,), dtype=jnp.float32) * 0.1
    w2 = jax.random.normal(k3, (C, Cr), dtype=jnp.float32) * 0.1
    b2 = jax.random.normal(k4, (C,), dtype=jnp.float32) * 0.1

    # Case 1: HW multiple of 128 (16x16 = 256).
    x1 = jax.random.normal(kx1, (B, C, 16, 16), dtype=jnp.float32)
    out1 = jax.block_until_ready(cbam_channel(x1, w1, b1, w2, b2))
    ref1 = _reference(x1, w1, b1, w2, b2)
    assert out1.shape == x1.shape
    assert jnp.allclose(out1, ref1, atol=1e-4, rtol=1e-4), "mismatch (16x16)"

    # Case 2: HW NOT a multiple of 128 (14x14 = 196) -> masked tail path.
    x2 = jax.random.normal(kx2, (B, C, 14, 14), dtype=jnp.float32)
    out2 = jax.block_until_ready(cbam_channel(x2, w1, b1, w2, b2))
    ref2 = _reference(x2, w1, b1, w2, b2)
    assert out2.shape == x2.shape
    assert jnp.allclose(out2, ref2, atol=1e-4, rtol=1e-4), "mismatch (14x14)"

    print("KERNEL_OK")
</pallas_src>

<mosaic_0001>
module attributes {stable_mosaic.version = 11 : i64} {
  func.func @_cbam_channel_kernel(%arg0: i32, %arg1: memref<32x2xf32, #tpu.memory_space<vmem>>, %arg2: memref<1x2xf32, #tpu.memory_space<vmem>>, %arg3: memref<2x32xf32, #tpu.memory_space<vmem>>, %arg4: memref<1x32xf32, #tpu.memory_space<vmem>>, %arg5: memref<1x32x256xf32, #tpu.memory_space<vmem>>, %arg6: memref<1x32x256xf32, #tpu.memory_space<vmem>>) attributes {dimension_semantics = [#tpu.dimension_semantics<parallel>], iteration_bounds = array<i64: 2>, scalar_prefetch = 0 : i64, scratch_operands = 0 : i64, tpu.core_type = #tpu.core_type<tc>, window_params = [{pipeline_mode = #tpu.pipeline_mode<synchronous>, transform_indices = @transform_0, window_bounds = array<i64: 32, 2>}, {pipeline_mode = #tpu.pipeline_mode<synchronous>, transform_indices = @transform_1, window_bounds = array<i64: 1, 2>}, {pipeline_mode = #tpu.pipeline_mode<synchronous>, transform_indices = @transform_2, window_bounds = array<i64: 2, 32>}, {pipeline_mode = #tpu.pipeline_mode<synchronous>, transform_indices = @transform_3, window_bounds = array<i64: 1, 32>}, {transform_indices = @transform_4, window_bounds = array<i64: 1, 32, 256>}, {transform_indices = @transform_5, window_bounds = array<i64: 1, 32, 256>}]} {
    %c0 = arith.constant 0 : index
    %c0_0 = arith.constant 0 : index
    %c0_1 = arith.constant 0 : index
    %0 = vector.load %arg5[%c0, %c0_0, %c0_1] : memref<1x32x256xf32, #tpu.memory_space<vmem>>, vector<1x32x256xf32>
    %cst = arith.constant dense<0.000000e+00> : vector<1x32xf32>
    %1 = vector.multi_reduction <add>, %0, %cst [2] : vector<1x32x256xf32> to vector<1x32xf32>
    %cst_2 = arith.constant 3.906250e-03 : f32
    %2 = vector.broadcast %cst_2 : f32 to vector<1x32xf32>
    %3 = arith.mulf %1, %2 : vector<1x32xf32>
    %cst_3 = arith.constant dense<0xFF800000> : vector<1x32xf32>
    %4 = vector.multi_reduction <maximumf>, %0, %cst_3 [2] : vector<1x32x256xf32> to vector<1x32xf32>
    %5 = tpu.concatenate %3, %4 in 0 : vector<1x32xf32>, vector<1x32xf32> -> vector<2x32xf32>
    %c0_4 = arith.constant 0 : index
    %c0_5 = arith.constant 0 : index
    %6 = vector.load %arg1[%c0_4, %c0_5] : memref<32x2xf32, #tpu.memory_space<vmem>>, vector<32x2xf32>
    %cst_6 = arith.constant dense<0.000000e+00> : vector<2x2xf32>
    %7 = tpu.matmul %5, %6, %cst_6 {dimension_numbers = #tpu.dot_dimension_numbers<[1], [0], [0], [1], [0, 0, 1, 1], [], []>} : vector<2x32xf32>, vector<32x2xf32>, vector<2x2xf32> -> vector<2x2xf32>
    %c0_7 = arith.constant 0 : index
    %c0_8 = arith.constant 0 : index
    %8 = vector.load %arg2[%c0_7, %c0_8] : memref<1x2xf32, #tpu.memory_space<vmem>>, vector<1x2xf32>
    %9 = vector.broadcast %8 : vector<1x2xf32> to vector<2x2xf32>
    %10 = arith.addf %7, %9 : vector<2x2xf32>
    %cst_9 = arith.constant 0.000000e+00 : f32
    %11 = vector.broadcast %cst_9 : f32 to vector<2x2xf32>
    %12 = arith.maximumf %10, %11 : vector<2x2xf32>
    %c0_10 = arith.constant 0 : index
    %c0_11 = arith.constant 0 : index
    %13 = vector.load %arg3[%c0_10, %c0_11] : memref<2x32xf32, #tpu.memory_space<vmem>>, vector<2x32xf32>
    %cst_12 = arith.constant dense<0.000000e+00> : vector<2x32xf32>
    %14 = tpu.matmul %12, %13, %cst_12 {dimension_numbers = #tpu.dot_dimension_numbers<[1], [0], [0], [1], [0, 0, 1, 1], [], []>} : vector<2x2xf32>, vector<2x32xf32>, vector<2x32xf32> -> vector<2x32xf32>
    %c0_13 = arith.constant 0 : index
    %c0_14 = arith.constant 0 : index
    %15 = vector.load %arg4[%c0_13, %c0_14] : memref<1x32xf32, #tpu.memory_space<vmem>>, vector<1x32xf32>
    %16 = vector.broadcast %15 : vector<1x32xf32> to vector<2x32xf32>
    %17 = arith.addf %14, %16 : vector<2x32xf32>
    %18 = vector.extract_strided_slice %17 {offsets = [0, 0], sizes = [1, 32], strides = [1, 1]} : vector<2x32xf32> to vector<1x32xf32>
    %19 = vector.extract_strided_slice %17 {offsets = [1, 0], sizes = [1, 32], strides = [1, 1]} : vector<2x32xf32> to vector<1x32xf32>
    %20 = arith.addf %18, %19 : vector<1x32xf32>
    %21 = arith.negf %20 : vector<1x32xf32>
    %22 = math.exp %21 : vector<1x32xf32>
    %cst_15 = arith.constant 1.000000e+00 : f32
    %23 = vector.broadcast %cst_15 : f32 to vector<1x32xf32>
    %24 = arith.addf %23, %22 : vector<1x32xf32>
    %25 = arith.divf %23, %24 : vector<1x32xf32>
    %26 = vector.shape_cast %25 : vector<1x32xf32> to vector<1x32x1xf32>
    %27 = vector.broadcast %26 : vector<1x32x1xf32> to vector<1x32x256xf32>
    %28 = arith.mulf %0, %27 : vector<1x32x256xf32>
    %c0_16 = arith.constant 0 : index
    %c0_17 = arith.constant 0 : index
    %c0_18 = arith.constant 0 : index
    %29 = vector.load %arg6[%c0_16, %c0_17, %c0_18] : memref<1x32x256xf32, #tpu.memory_space<vmem>>, vector<1x32x256xf32>
    tpu.vector_store %arg6[%c0_16, %c0_17, %c0_18], %28 {strides = array<i32>} : memref<1x32x256xf32, #tpu.memory_space<vmem>>, vector<1x32x256xf32>,
    return
  }
  func.func @transform_0(%arg0: i32) -> (i32, i32) {
    %c0_i32 = arith.constant 0 : i32
    %c0_i32_0 = arith.constant 0 : i32
    %c0_i32_1 = arith.constant 0 : i32
    return %c0_i32, %c0_i32_0 : i32, i32
  }
  func.func @transform_1(%arg0: i32) -> (i32, i32) {
    %c0_i32 = arith.constant 0 : i32
    %c0_i32_0 = arith.constant 0 : i32
    %c0_i32_1 = arith.constant 0 : i32
    return %c0_i32, %c0_i32_0 : i32, i32
  }
  func.func @transform_2(%arg0: i32) -> (i32, i32) {
    %c0_i32 = arith.constant 0 : i32
    %c0_i32_0 = arith.constant 0 : i32
    %c0_i32_1 = arith.constant 0 : i32
    return %c0_i32, %c0_i32_0 : i32, i32
  }
  func.func @transform_3(%arg0: i32) -> (i32, i32) {
    %c0_i32 = arith.constant 0 : i32
    %c0_i32_0 = arith.constant 0 : i32
    %c0_i32_1 = arith.constant 0 : i32
    return %c0_i32, %c0_i32_0 : i32, i32
  }
  func.func @transform_4(%arg0: i32) -> (i32, i32, i32) {
    %c0_i32 = arith.constant 0 : i32
    %c0_i32_0 = arith.constant 0 : i32
    %c0_i32_1 = arith.constant 0 : i32
    return %arg0, %c0_i32, %c0_i32_0 : i32, i32, i32
  }
  func.func @transform_5(%arg0: i32) -> (i32, i32, i32) {
    %c0_i32 = arith.constant 0 : i32
    %c0_i32_0 = arith.constant 0 : i32
    %c0_i32_1 = arith.constant 0 : i32
    return %arg0, %c0_i32, %c0_i32_0 : i32, i32, i32
  }
}

</mosaic_0001>

<llo_original>
// kernel: cbam_channel.1
$region0: #{cbam_channel.1}
  #allocation0 [shape = 'u32[]', space=smem, size = 0x4, offset = 0x4, fixed_abs, tag = 'smem constant byte address 0x4 - core index']
  #allocation1 [shape = 'u32[144,128]{1,0:T(1,128)}', space=vmem, size = 0x12000, scoped, tag = 'internal scratch']
  %s0 = inlined_call_operand.vmem [shape: f32[32,2], index: 0, kind: input, shape index: {}]
  %s1 = inlined_call_operand.vmem [shape: f32[1,2], index: 1, kind: input, shape index: {}]
  %s2 = inlined_call_operand.vmem [shape: f32[2,32], index: 2, kind: input, shape index: {}]
  %s3 = inlined_call_operand.vmem [shape: f32[1,32], index: 3, kind: input, shape index: {}]
  %s4 = inlined_call_operand.vmem [shape: f32[2,32,256], index: 4, kind: input, shape index: {}]
  %s5 = inlined_call_operand.vmem [shape: f32[2,32,256], index: 5, kind: output, shape index: {}]
  %s6 = sld [smem:[#allocation0]]
  $region53: #{cbam_channel.1} parent=0
    _
  %s8 = ssub.s32 1, %s6
  %s9 = scalar_select 0, %s8, %s6
  loop: start=0, step=1, limit=4
  $region2: #{cbam_channel.1} parent=0 // loop_pre_header
    _
  $region3: #{cbam_channel.1} parent=0 // loop_header
    %s11 = sphi 0, %s15
    %p12 = scmp.ge.s32.totalorder %s11, 4
    %s19 = sphi 0, %s19
    %s21 = sphi 0, %s19
    %s22 = sphi 0, %s21
    %s36 = sphi 0, %s22
    %s40 = sphi 0, %s40
    %s42 = sphi 0, %s40
    %s43 = sphi 0, %s42
    %s57 = sphi 0, %s43
    %s61 = sphi 0, %s61
    %s63 = sphi 0, %s61
    %s64 = sphi 0, %s63
    %s78 = sphi 0, %s64
    %s82 = sphi 0, %s82
    %s84 = sphi 0, %s82
    %s85 = sphi 0, %s84
    %s99 = sphi 0, %s85
    %s105 = sphi 0, %s107
    %s108 = sphi 0, %s105
    %s109 = sphi 0, %s108
    %s125 = sphi 0, %s109
    %s131 = sphi 0, %s133
    %s134 = sphi 0, %s131
    %s135 = sphi 0, %s134
    %s151 = sphi 0, %s135
  $region4: #{cbam_channel.1} parent=0 // loop_header_branch
    %14 = sbr.rel (%p12) target = $region8
  $region5: #{cbam_channel.1} parent=0 // loop_body
    %s16 = ssub.s32 %s11, 1
    %s17 = ssub.s32 %s11, 2
    %s18 = sadd.s32 %s11, 1
    %s20 = sadd.s32 %s19, 1
    %p23 = scmp.eq.s32.totalorder %s11, 1
    %p24 = scmp.ne.s32.totalorder %s19, %s21
    %p25 = scmp.eq.s32.totalorder %s11, 0
    %p26 = por %p24, %p25
    %p27 = scmp.ne.s32.totalorder %s19, %s21
    %p28 = scmp.eq.s32.totalorder %s16, 1
    %p29 = por %p27, %p28
    %p30 = scmp.ne.s32.totalorder %s21, %s22
    %p31 = scmp.eq.s32.totalorder %s16, 0
    %p32 = por %p30, %p31
    %p33 = scmp.ne.s32.totalorder %s21, %s22
    %p34 = scmp.eq.s32.totalorder %s17, 1
    %p35 = por %p33, %p34
    %p37 = scmp.ne.s32.totalorder %s22, %s36
    %p38 = scmp.eq.s32.totalorder %s17, 0
    %p39 = por %p37, %p38
    %s41 = sadd.s32 %s40, 1
    %p44 = scmp.eq.s32.totalorder %s11, 1
    %p45 = scmp.ne.s32.totalorder %s40, %s42
    %p46 = scmp.eq.s32.totalorder %s11, 0
    %p47 = por %p45, %p46
    %p48 = scmp.ne.s32.totalorder %s40, %s42
    %p49 = scmp.eq.s32.totalorder %s16, 1
    %p50 = por %p48, %p49
    %p51 = scmp.ne.s32.totalorder %s42, %s43
    %p52 = scmp.eq.s32.totalorder %s16, 0
    %p53 = por %p51, %p52
    %p54 = scmp.ne.s32.totalorder %s42, %s43
    %p55 = scmp.eq.s32.totalorder %s17, 1
    %p56 = por %p54, %p55
    %p58 = scmp.ne.s32.totalorder %s43, %s57
    %p59 = scmp.eq.s32.totalorder %s17, 0
    %p60 = por %p58, %p59
    %s62 = sadd.s32 %s61, 1
    %p65 = scmp.eq.s32.totalorder %s11, 1
    %p66 = scmp.ne.s32.totalorder %s61, %s63
    %p67 = scmp.eq.s32.totalorder %s11, 0
    %p68 = por %p66, %p67
    %p69 = scmp.ne.s32.totalorder %s61, %s63
    %p70 = scmp.eq.s32.totalorder %s16, 1
    %p71 = por %p69, %p70
    %p72 = scmp.ne.s32.totalorder %s63, %s64
    %p73 = scmp.eq.s32.totalorder %s16, 0
    %p74 = por %p72, %p73
    %p75 = scmp.ne.s32.totalorder %s63, %s64
    %p76 = scmp.eq.s32.totalorder %s17, 1
    %p77 = por %p75, %p76
    %p79 = scmp.ne.s32.totalorder %s64, %s78
    %p80 = scmp.eq.s32.totalorder %s17, 0
    %p81 = por %p79, %p80
    %s83 = sadd.s32 %s82, 1
    %p86 = scmp.eq.s32.totalorder %s11, 1
    %p87 = scmp.ne.s32.totalorder %s82, %s84
    %p88 = scmp.eq.s32.totalorder %s11, 0
    %p89 = por %p87, %p88
    %p90 = scmp.ne.s32.totalorder %s82, %s84
    %p91 = scmp.eq.s32.totalorder %s16, 1
    %p92 = por %p90, %p91
    %p93 = scmp.ne.s32.totalorder %s84, %s85
    %p94 = scmp.eq.s32.totalorder %s16, 0
    %p95 = por %p93, %p94
    %p96 = scmp.ne.s32.totalorder %s84, %s85
    %p97 = scmp.eq.s32.totalorder %s17, 1
    %p98 = por %p96, %p97
    %p100 = scmp.ne.s32.totalorder %s85, %s99
    %p101 = scmp.eq.s32.totalorder %s17, 0
    %p102 = por %p100, %p101
    %s103 = ssub.s32 %s11, %s18
    %p104 = scmp.eq.s32.totalorder %s103, 0
    %s106 = sadd.s32 %s105, 1
    %s107 = scalar_select %p104, %s105, %s106
    %p110 = pneg %p104
    %p111 = scmp.eq.s32.totalorder %s11, 1
    %p112 = por %p110, %p111
    %p113 = scmp.ne.s32.totalorder %s105, %s108
    %p114 = scmp.eq.s32.totalorder %s11, 0
    %p115 = por %p113, %p114
    %p116 = scmp.ne.s32.totalorder %s105, %s108
    %p117 = scmp.eq.s32.totalorder %s16, 1
    %p118 = por %p116, %p117
    %p119 = scmp.ne.s32.totalorder %s108, %s109
    %p120 = scmp.eq.s32.totalorder %s16, 0
    %p121 = por %p119, %p120
    %p122 = scmp.ne.s32.totalorder %s108, %s109
    %p123 = scmp.eq.s32.totalorder %s17, 1
    %p124 = por %p122, %p123
    %p126 = scmp.ne.s32.totalorder %s109, %s125
    %p127 = scmp.eq.s32.totalorder %s17, 0
    %p128 = por %p126, %p127
    %s129 = ssub.s32 %s11, %s18
    %p130 = scmp.eq.s32.totalorder %s129, 0
    %s132 = sadd.s32 %s131, 1
    %s133 = scalar_select %p130, %s131, %s132
    %p136 = pneg %p130
    %p137 = scmp.eq.s32.totalorder %s11, 1
    %p138 = por %p136, %p137
    %p139 = scmp.ne.s32.totalorder %s131, %s134
    %p140 = scmp.eq.s32.totalorder %s11, 0
    %p141 = por %p139, %p140
    %p142 = scmp.ne.s32.totalorder %s131, %s134
    %p143 = scmp.eq.s32.totalorder %s16, 1
    %p144 = por %p142, %p143
    %p145 = scmp.ne.s32.totalorder %s134, %s135
    %p146 = scmp.eq.s32.totalorder %s16, 0
    %p147 = por %p145, %p146
    %p148 = scmp.ne.s32.totalorder %s134, %s135
    %p149 = scmp.eq.s32.totalorder %s17, 1
    %p150 = por %p148, %p149
    %p152 = scmp.ne.s32.totalorder %s135, %s151
    %p153 = scmp.eq.s32.totalorder %s17, 0
    %p154 = por %p152, %p153
    %p155 = scmp.le.s32.totalorder 1, %s11
    %p156 = scmp.lt.s32.totalorder %s11, 3
    %p157 = pnand %p155, %p156
    %p158 = pneg %p157
    // Predicated region
    $region9: #{cbam_channel.1} parent=5 // pred_check
      _
    $region10: #{cbam_channel.1} parent=5 // pred_check_branch
      %160 = sbr.rel (%p157) target = $region12
    $region11: #{cbam_channel.1} parent=5 // pred_region
      %s161 = ssub.s32 %s11, 1
      // Predicated region
      $region13: #{cbam_channel.1} parent=11 // pred_check
        %p162 = pneg %p32
      $region14: #{cbam_channel.1} parent=11 // pred_check_branch
        %164 = sbr.rel (%p162) target = $region16
      $region15: #{cbam_channel.1} parent=11 // pred_region
        _
      $region16: #{cbam_channel.1} parent=11 // pred_fallthru
        _
      // Predicated region
      $region17: #{cbam_channel.1} parent=11 // pred_check
        %p165 = pneg %p53
      $region18: #{cbam_channel.1} parent=11 // pred_check_branch
        %167 = sbr.rel (%p165) target = $region20
      $region19: #{cbam_channel.1} parent=11 // pred_region
        _
      $region20: #{cbam_channel.1} parent=11 // pred_fallthru
        _
      // Predicated region
      $region21: #{cbam_channel.1} parent=11 // pred_check
        %p168 = pneg %p74
      $region22: #{cbam_channel.1} parent=11 // pred_check_branch
        %170 = sbr.rel (%p168) target = $region24
      $region23: #{cbam_channel.1} parent=11 // pred_region
        _
      $region24: #{cbam_channel.1} parent=11 // pred_fallthru
        _
      // Predicated region
      $region25: #{cbam_channel.1} parent=11 // pred_check
        %p171 = pneg %p95
      $region26: #{cbam_channel.1} parent=11 // pred_check_branch
        %173 = sbr.rel (%p171) target = $region28
      $region27: #{cbam_channel.1} parent=11 // pred_region
        _
      $region28: #{cbam_channel.1} parent=11 // pred_fallthru
        _
    $region12: #{cbam_channel.1} parent=5 // pred_fallthru
      _
    %p174 = scmp.lt.s32.totalorder %s11, 2
    // Predicated region
    $region29: #{cbam_channel.1} parent=5 // pred_check
      %p175 = pneg %p174
    $region30: #{cbam_channel.1} parent=5 // pred_check_branch
      %177 = sbr.rel (%p175) target = $region32
    $region31: #{cbam_channel.1} parent=5 // pred_region
      // Predicated region
      $region33: #{cbam_channel.1} parent=31 // pred_check
        %p178 = pneg %p115
      $region34: #{cbam_channel.1} parent=31 // pred_check_branch
        %180 = sbr.rel (%p178) target = $region36
      $region35: #{cbam_channel.1} parent=31 // pred_region
        %p181 = scmp.lt.s32.totalorder %s11, 1
        %s182 = scalar_select %p181, %s11, 1
        %s183 = smul.addr %s182, 8
        %s184 = smul.addr %s183, 8
        %s185 = scalar_lea.vmem %s4, %s184
      $region36: #{cbam_channel.1} parent=31 // pred_fallthru
        _
    $region32: #{cbam_channel.1} parent=5 // pred_fallthru
      _
    %p186 = scmp.le.s32.totalorder 1, %s11
    %p187 = scmp.lt.s32.totalorder %s11, 3
    %p188 = pnand %p186, %p187
    %p189 = pneg %p188
    // Predicated region
    $region37: #{cbam_channel.1} parent=5 // pred_check
      _
    $region38: #{cbam_channel.1} parent=5 // pred_check_branch
      %191 = sbr.rel (%p188) target = $region40
    $region39: #{cbam_channel.1} parent=5 // pred_region
      %s192 = ssub.s32 %s11, 1
      %p193 = pneg %p32
      %p194 = pneg %p29
      %p195 = pneg %p53
      %p196 = pneg %p50
      %p197 = pneg %p74
      %p198 = pneg %p71
      %p199 = pneg %p95
      %p200 = pneg %p92
      %p201 = scmp.lt.s32.totalorder %s16, 1
      %s202 = scalar_select %p201, %s16, 1
      %s203 = smul.addr %s202, 8
      %s204 = smul.addr %s203, 8
      %s205 = scalar_lea.vmem %s4, %s204
      %p206 = pneg %p121
      %p207 = pneg %p118
      %p208 = pneg %p147
      %p209 = pneg %p144
      %p210 = scmp.lt.s32.totalorder %s16, 1
      %s211 = scalar_select %p210, %s16, 1
      %s212 = smul.addr %s211, 8
      %s213 = smul.addr %s212, 8
      %s214 = scalar_lea.vmem %s5, %s213
      %p215 = scmp.lt.s32.totalorder %s16, 1
      %s216 = scalar_select %p215, %s16, 1
      %s217 = smul.addr %s216, 8
      %s218 = smul.addr %s217, 8
      %s219 = scalar_lea.vmem %s4, %s218
      %p220 = scmp.lt.s32.totalorder %s16, 1
      %s221 = scalar_select %p220, %s16, 1
      %s222 = smul.addr %s221, 8
      %s223 = smul.addr %s222, 8
      %s224 = scalar_lea.vmem %s5, %s223
      %v225 = vld [vmem:[%s219] sm:$0xff]
      %v226 = vld [vmem:[%s219 + $0x8] sm:$0xff]
      %v227 = vld [vmem:[%s219 + $0x10] sm:$0xff]
      %v228 = vld [vmem:[%s219 + $0x18] sm:$0xff]
      %v229 = vld [vmem:[%s219 + $0x20] sm:$0xff]
      %v230 = vld [vmem:[%s219 + $0x28] sm:$0xff]
      %v231 = vld [vmem:[%s219 + $0x30] sm:$0xff]
      %v232 = vld [vmem:[%s219 + $0x38] sm:$0xff]
      %v233 = vadd.f32 %v225, %v226
      %234 = vadd.xlane.f32.xlu0 %v233
      %v235 = vpop.xlane.xlu0 %234
      %v236 = vadd.f32 %v227, %v228
      %237 = vadd.xlane.f32.xlu0 %v236
      %v238 = vpop.xlane.xlu0 %237
      %v239 = vadd.f32 %v229, %v230
      %240 = vadd.xlane.f32.xlu0 %v239
      %v241 = vpop.xlane.xlu0 %240
      %v242 = vadd.f32 %v231, %v232
      %243 = vadd.xlane.f32.xlu0 %v242
      %v244 = vpop.xlane.xlu0 %243
      %v245 = vmul.f32 %v235, 0.00390625
      %v246 = vmul.f32 %v238, 0.00390625
      %v247 = vmul.f32 %v241, 0.00390625
      %v248 = vmul.f32 %v244, 0.00390625
      %v249 = vmax.f32 %v225, %v226
      %250 = vmax.xlane.f32.xlu0 %v249
      %v251 = vpop.xlane.xlu0 %250
      %v252 = vmax.f32 %v227, %v228
      %253 = vmax.xlane.f32.xlu0 %v252
      %v254 = vpop.xlane.xlu0 %253
      %v255 = vmax.f32 %v229, %v230
      %256 = vmax.xlane.f32.xlu0 %v255
      %v257 = vpop.xlane.xlu0 %256
      %v258 = vmax.f32 %v231, %v232
      %259 = vmax.xlane.f32.xlu0 %v258
      %v260 = vpop.xlane.xlu0 %259
      %v265 = vlaneseq
      %v266 = vand.u32 %v265, 127
      %v267 = vlaneseq
      %v268 = vshrl.u32 %v267, 7
      %v269 = vsub.s32 %v266, %v268
      %v270 = vrot.slane %v245, %v269
      %v271 = vadd.s32 %v266, 4294967288
      %v272 = vlaneseq
      %v273 = vshrl.u32 %v272, 7
      %v274 = vsub.s32 %v271, %v273
      %v275 = vrot.slane %v246, %v274
      %vm276 = vcmask 130112
      %v277 = vsel %vm276, %v275, %v270
      %v278 = vadd.s32 %v266, 4294967280
      %v279 = vlaneseq
      %v280 = vshrl.u32 %v279, 7
      %v281 = vsub.s32 %v278, %v280
      %v282 = vrot.slane %v247, %v281
      %vm283 = vcmask 195712
      %v284 = vsel %vm283, %v282, %v277
      %v285 = vadd.s32 %v266, 4294967272
      %v286 = vlaneseq
      %v287 = vshrl.u32 %v286, 7
      %v288 = vsub.s32 %v285, %v287
      %v289 = vrot.slane %v248, %v288
      %vm290 = vcmask 261312
      %v291 = vsel %vm290, %v289, %v284
      %v297 = vlaneseq
      %v298 = vshrl.u32 %v297, 7
      %v299 = vsub.s32 %v266, %v298
      %v300 = vrot.slane %v251, %v299
      %v301 = vlaneseq
      %v302 = vshrl.u32 %v301, 7
      %v303 = vsub.s32 %v271, %v302
      %v304 = vrot.slane %v254, %v303
      %v305 = vsel %vm276, %v304, %v300
      %v306 = vlaneseq
      %v307 = vshrl.u32 %v306, 7
      %v308 = vsub.s32 %v278, %v307
      %v309 = vrot.slane %v257, %v308
      %v310 = vsel %vm283, %v309, %v305
      %v311 = vlaneseq
      %v312 = vshrl.u32 %v311, 7
      %v313 = vsub.s32 %v285, %v312
      %v314 = vrot.slane %v260, %v313
      %v315 = vsel %vm290, %v314, %v310
      %vm317 = vcmask 1040384
      %v318 = vsel %vm317, %v291, %v315
      %v319 = vld [vmem:[%s0] sm:$0xff]
      %v320 = vld [vmem:[%s0 + $0x8] sm:$0xff]
      %v321 = vld [vmem:[%s0 + $0x10] sm:$0xff]
      %v322 = vld [vmem:[%s0 + $0x18] sm:$0xff]
      %v323 = vld [vmem:[%s1] sm:$0x1]
      %v325 = vlaneseq
      %v326 = vshrl.u32 %v325, 7
      %v327 = vsub.s32 0, %v326
      %v328 = vrot.slane %v323, %v327
      %vm330 = vcmask 261120
      %v332 = vsel %vm330, %v318, 0
      %334 = vmatprep.subr.mxu0 0.0
      %335 = vmatpush1.msra.mxu0 0.0
      %336 = vmatprep.subr.mxu0 0.0
      %337 = vmatpush1.msra.mxu0 0.0
      %338 = vmatprep.subr.mxu0 0.0
      %339 = vmatpush1.msra.mxu0 0.0
      %340 = vmatprep.subr.mxu0 0.0
      %341 = vmatpush1.msra.mxu0 0.0
      %342 = vmatprep.subr.mxu0 0.0
      %343 = vmatpush1.msra.mxu0 0.0
      %344 = vmatprep.subr.mxu0 0.0
      %345 = vmatpush1.msra.mxu0 0.0
      %346 = vmatprep.subr.mxu0 0.0
      %347 = vmatpush1.msra.mxu0 0.0
      %348 = vmatprep.subr.mxu0 0.0
      %349 = vmatpush1.msra.mxu0 0.0
      %350 = vmatprep.subr.mxu0 0.0
      %351 = vmatpush1.msra.mxu0 0.0
      %352 = vmatprep.subr.mxu0 0.0
      %353 = vmatpush1.msra.mxu0 0.0
      %354 = vmatprep.subr.mxu0 0.0
      %355 = vmatpush1.msra.mxu0 0.0
      %356 = vmatprep.subr.mxu0 0.0
      %357 = vmatpush1.msra.mxu0 0.0
      %358 = vmatprep.subr.mxu0 0.0
      %359 = vmatpush1.msra.mxu0 %v322
      %360 = vmatprep.subr.mxu0 0.0
      %361 = vmatpush1.msra.mxu0 %v321
      %362 = vmatprep.subr.mxu0 0.0
      %363 = vmatpush1.msra.mxu0 %v320
      %364 = vmatprep.subr.mxu0 0.0
      %365 = vmatpush1.msra.mxu0 %v319
      %366 = vmatprep.subr.mxu0 0.0
      %367 = vmatpush2.msra.mxu0 0.0
      %368 = vmatprep.subr.mxu0 0.0
      %369 = vmatpush2.msra.mxu0 0.0
      %370 = vmatprep.subr.mxu0 0.0
      %371 = vmatpush2.msra.mxu0 0.0
      %372 = vmatprep.subr.mxu0 0.0
      %373 = vmatpush2.msra.mxu0 0.0
      %374 = vmatprep.subr.mxu0 0.0
      %375 = vmatpush2.msra.mxu0 0.0
      %376 = vmatprep.subr.mxu0 0.0
      %377 = vmatpush2.msra.mxu0 0.0
      %378 = vmatprep.subr.mxu0 0.0
      %379 = vmatpush2.msra.mxu0 0.0
      %380 = vmatprep.subr.mxu0 0.0
      %381 = vmatpush2.msra.mxu0 0.0
      %382 = vmatprep.subr.mxu0 0.0
      %383 = vmatpush2.msra.mxu0 0.0
      %384 = vmatprep.subr.mxu0 0.0
      %385 = vmatpush2.msra.mxu0 0.0
      %386 = vmatprep.subr.mxu0 0.0
      %387 = vmatpush2.msra.mxu0 0.0
      %388 = vmatprep.subr.mxu0 0.0
      %389 = vmatpush2.msra.mxu0 0.0
      %390 = vmatprep.subr.mxu0 0.0
      %391 = vmatpush2.msra.mxu0 0.0
      %392 = vmatprep.subr.mxu0 0.0
      %393 = vmatpush2.msra.mxu0 0.0
      %394 = vmatprep.subr.mxu0 0.0
      %395 = vmatpush2.msra.mxu0 0.0
      %396 = vmatprep.subr.mxu0 0.0
      %397 = vmatpush2.msra.mxu0 0.0
      %398 = vmatprep.mubr.f32.mxu0 0.0
      %399 = vmatmul.mubr.f32.gmra.mxu0 %v332
      %v400 = vpop.f32.mrf.mxu0
      %v401 = vadd.f32 %v328, %v400
      %v402 = vpop.f32.mrf.mxu0
      %403 = vdwg.mxu0
      %v404 = vmax.f32 %v401, 0.0
      %v405 = vld [vmem:[%s2] sm:$0x3]
      %v406 = vld [vmem:[%s3] sm:$0x1]
      %v408 = vlaneseq
      %v409 = vshrl.u32 %v408, 7
      %v410 = vsub.s32 0, %v409
      %v411 = vrot.slane %v406, %v410
      %vm413 = vcmask 15360
      %v415 = vsel %vm413, %v404, 0
      %vm417 = vcmask 1041408
      %v419 = vsel %vm417, %v405, 0
      %421 = vmatprep.subr.mxu0 0.0
      %422 = vmatpush1.msra.mxu0 0.0
      %423 = vmatprep.subr.mxu0 0.0
      %424 = vmatpush1.msra.mxu0 0.0
      %425 = vmatprep.subr.mxu0 0.0
      %426 = vmatpush1.msra.mxu0 0.0
      %427 = vmatprep.subr.mxu0 0.0
      %428 = vmatpush1.msra.mxu0 0.0
      %429 = vmatprep.subr.mxu0 0.0
      %430 = vmatpush1.msra.mxu0 0.0
      %431 = vmatprep.subr.mxu0 0.0
      %432 = vmatpush1.msra.mxu0 0.0
      %433 = vmatprep.subr.mxu0 0.0
      %434 = vmatpush1.msra.mxu0 0.0
      %435 = vmatprep.subr.mxu0 0.0
      %436 = vmatpush1.msra.mxu0 0.0
      %437 = vmatprep.subr.mxu0 0.0
      %438 = vmatpush1.msra.mxu0 0.0
      %439 = vmatprep.subr.mxu0 0.0
      %440 = vmatpush1.msra.mxu0 0.0
      %441 = vmatprep.subr.mxu0 0.0
      %442 = vmatpush1.msra.mxu0 0.0
      %443 = vmatprep.subr.mxu0 0.0
      %444 = vmatpush1.msra.mxu0 0.0
      %445 = vmatprep.subr.mxu0 0.0
      %446 = vmatpush1.msra.mxu0 0.0
      %447 = vmatprep.subr.mxu0 0.0
      %448 = vmatpush1.msra.mxu0 0.0
      %449 = vmatprep.subr.mxu0 0.0
      %450 = vmatpush1.msra.mxu0 0.0
      %451 = vmatprep.subr.mxu0 0.0
      %452 = vmatpush1.msra.mxu0 %v419
      %453 = vmatprep.subr.mxu0 0.0
      %454 = vmatpush2.msra.mxu0 0.0
      %455 = vmatprep.subr.mxu0 0.0
      %456 = vmatpush2.msra.mxu0 0.0
      %457 = vmatprep.subr.mxu0 0.0
      %458 = vmatpush2.msra.mxu0 0.0
      %459 = vmatprep.subr.mxu0 0.0
      %460 = vmatpush2.msra.mxu0 0.0
      %461 = vmatprep.subr.mxu0 0.0
      %462 = vmatpush2.msra.mxu0 0.0
      %463 = vmatprep.subr.mxu0 0.0
      %464 = vmatpush2.msra.mxu0 0.0
      %465 = vmatprep.subr.mxu0 0.0
      %466 = vmatpush2.msra.mxu0 0.0
      %467 = vmatprep.subr.mxu0 0.0
      %468 = vmatpush2.msra.mxu0 0.0
      %469 = vmatprep.subr.mxu0 0.0
      %470 = vmatpush2.msra.mxu0 0.0
      %471 = vmatprep.subr.mxu0 0.0
      %472 = vmatpush2.msra.mxu0 0.0
      %473 = vmatprep.subr.mxu0 0.0
      %474 = vmatpush2.msra.mxu0 0.0
      %475 = vmatprep.subr.mxu0 0.0
      %476 = vmatpush2.msra.mxu0 0.0
      %477 = vmatprep.subr.mxu0 0.0
      %478 = vmatpush2.msra.mxu0 0.0
      %479 = vmatprep.subr.mxu0 0.0
      %480 = vmatpush2.msra.mxu0 0.0
      %481 = vmatprep.subr.mxu0 0.0
      %482 = vmatpush2.msra.mxu0 0.0
      %483 = vmatprep.subr.mxu0 0.0
      %484 = vmatpush2.msra.mxu0 0.0
      %485 = vmatprep.mubr.f32.mxu0 0.0
      %486 = vmatmul.mubr.f32.gmra.mxu0 %v415
      %v487 = vpop.f32.mrf.mxu0
      %v488 = vadd.f32 %v411, %v487
      %v489 = vpop.f32.mrf.mxu0
      %490 = vdwg.mxu0
      %v492 = vrot.slane %v488, 1
      %v494 = vadd.f32 %v488, %v492
      %v495 = vxor.u32 %v494, 2147483648
      %v496 = vmul.f32 %v495, 1.442695
      %v497 = vpow.pop %v496
      %v498 = vadd.f32 %v497, 1.0
      %v499 = vrcp.pop %v498
      %v500 = vmul.f32 1.0, %v499
      %v501 = vlaneseq
      %v502 = vshrl.u32 %v501, 7
      %v503 = vsub.s32 0, %v502
      %v504 = vrot.slane %v500, %v503
      %506 = vbcast.lane.b32.xlu0 %v504, 256
      %v507 = vpop.permute.xlu0 %506
      %s509 = sor.u32 256, 8
      %510 = vbcast.lane.b32.xlu0 %v504, %s509
      %v511 = vpop.permute.xlu0 %510
      %s513 = sor.u32 256, 16
      %514 = vbcast.lane.b32.xlu0 %v504, %s513
      %v515 = vpop.permute.xlu0 %514
      %s517 = sor.u32 256, 24
      %518 = vbcast.lane.b32.xlu0 %v504, %s517
      %v519 = vpop.permute.xlu0 %518
      %v520 = vmul.f32 %v225, %v507
      %v521 = vmul.f32 %v226, %v507
      %v522 = vmul.f32 %v227, %v511
      %v523 = vmul.f32 %v228, %v511
      %v524 = vmul.f32 %v229, %v515
      %v525 = vmul.f32 %v230, %v515
      %v526 = vmul.f32 %v231, %v519
      %v527 = vmul.f32 %v232, %v519
      %528 = vst [vmem:[%s224] sm:$0xff] %v520
      %529 = vst [vmem:[%s224 + $0x8] sm:$0xff] %v521
      %530 = vst [vmem:[%s224 + $0x10] sm:$0xff] %v522
      %531 = vst [vmem:[%s224 + $0x18] sm:$0xff] %v523
      %532 = vst [vmem:[%s224 + $0x20] sm:$0xff] %v524
      %533 = vst [vmem:[%s224 + $0x28] sm:$0xff] %v525
      %534 = vst [vmem:[%s224 + $0x30] sm:$0xff] %v526
      %535 = vst [vmem:[%s224 + $0x38] sm:$0xff] %v527
      %p536 = scmp.lt.s32.totalorder %s16, 1
      %s537 = scalar_select %p536, %s16, 1
      %s538 = smul.addr %s537, 8
      %s539 = smul.addr %s538, 8
      %s540 = scalar_lea.vmem %s5, %s539
      // Predicated region
      $region41: #{cbam_channel.1} parent=39 // pred_check
        %p541 = pneg %p144
      $region42: #{cbam_channel.1} parent=39 // pred_check_branch
        %543 = sbr.rel (%p541) target = $region44
      $region43: #{cbam_channel.1} parent=39 // pred_region
        _
      $region44: #{cbam_channel.1} parent=39 // pred_fallthru
        _
    $region40: #{cbam_channel.1} parent=5 // pred_fallthru
      _
    %p544 = scmp.le.s32.totalorder 2, %s11
    // Predicated region
    $region45: #{cbam_channel.1} parent=5 // pred_check
      %p545 = pneg %p544
    $region46: #{cbam_channel.1} parent=5 // pred_check_branch
      %547 = sbr.rel (%p545) target = $region48
    $region47: #{cbam_channel.1} parent=5 // pred_region
      %s548 = ssub.s32 %s11, 2
      // Predicated region
      $region49: #{cbam_channel.1} parent=47 // pred_check
        %p549 = pneg %p150
      $region50: #{cbam_channel.1} parent=47 // pred_check_branch
        %551 = sbr.rel (%p549) target = $region52
      $region51: #{cbam_channel.1} parent=47 // pred_region
        %p552 = scmp.lt.s32.totalorder %s17, 1
        %s553 = scalar_select %p552, %s17, 1
        %s554 = smul.addr %s553, 8
        %s555 = smul.addr %s554, 8
        %s556 = scalar_lea.vmem %s5, %s555
      $region52: #{cbam_channel.1} parent=47 // pred_fallthru
        _
    $region48: #{cbam_channel.1} parent=5 // pred_fallthru
      _
  $region6: #{cbam_channel.1} parent=0 // loop_footer
    %s15 = sadd.s32 1, %s11
  $region7: #{cbam_channel.1} parent=0 // loop_footer_branch
    %10 = sbr.rel target = $region3
  $region8: #{cbam_channel.1} parent=0 // loop_exit
    _

</llo_original>
